<compile_context>
chip_gen: v5e
topology: v5e:2x2
jax: 0.10.0
libtpu: 0.0.40
codegen_flags: <defaults>
</compile_context>

<pallas_src>
import functools

import jax
import jax.numpy as jnp
from jax.experimental import pallas as pl
from jax.experimental.pallas import tpu as pltpu

# TODO(synk): Parameters.Striker.Max_velocity is not defined in the provided
# source; using a deterministic stand-in constant.
MAX_VELOCITY = 2.0

GROUP = 64               # samples packed per lane-dense row
IN_COLS = 8 * GROUP      # 512  (64 samples x 8 features, natural row-major order)
OUT_COLS = 2 * GROUP     # 128  (64 samples x 2 outputs -> full 128-lane stores)
CHUNK = 8 * GROUP        # 512 samples = 8 rows -> keeps the row axis 8-sublane aligned


def _round_up(n, m):
    return ((n + m - 1) // m) * m


def fcnet_kernel(x_ref, w_ref, b_ref, o_ref):
    # x_ref: (TR, 512) f32  -- 64 samples per row, natural row-major view of (B, 8)
    # w_ref: (512, 128) bf16 -- block-diagonal fused weight, resident across steps
    # b_ref: (1, 128)  f32  -- tiled fused bias, resident
    # o_ref: (TR, 128) f32
    xb = x_ref[...].astype(jnp.bfloat16)                 # in-kernel cast, hidden under DMA
    h = jnp.dot(xb, w_ref[...], preferred_element_type=jnp.float32)   # MXU, K=512
    o_ref[...] = (jnp.tanh(h + b_ref[...]) * MAX_VELOCITY).astype(o_ref.dtype)


def fuse_params(params):
    """Fold fc1/fc2/fc3 + 1/100 into one affine map, replicated block-diagonally.

    Valid because the PyTorch forward has NO nonlinearity between fc1/fc2/fc3.
    """
    w1, b1, w2, b2, w3, b3 = params                      # w: (in,out), b: (1,out)
    w_f = (w1 @ w2 @ w3) * (1.0 / 100.0)                 # (8, 2)
    b_f = ((b1 @ w2 + b2) @ w3 + b3) * (1.0 / 100.0)     # (1, 2)
    eye = jnp.eye(GROUP, dtype=w_f.dtype)
    # W_diag[8*i + a, 2*j + c] = delta(i, j) * w_f[a, c]
    w_diag = jnp.einsum("ij,ac->iajc", eye, w_f).reshape(IN_COLS, OUT_COLS)
    b_tiled = jnp.tile(b_f, (1, GROUP))                  # (1, 128)
    return w_diag.astype(jnp.bfloat16), b_tiled.astype(jnp.float32)


@functools.partial(jax.jit, static_argnames=("samples_per_tile",))
def fcnet_forward(x, w_diag, b_tiled, *, samples_per_tile=131072):
    """x: (B, 8) float32 -> (B, 2) float32."""
    B = x.shape[0]

    # Bounded padding: at most CHUNK-1 = 511 extra samples (never a whole tile).
    b_pad = _round_up(B, CHUNK)
    if b_pad != B:
        x = jnp.pad(x, ((0, b_pad - B), (0, 0)))

    R = b_pad // GROUP
    xr = x.reshape(R, IN_COLS)                           # free row-major reinterpretation

    # Rows per grid step: as large as the target tile allows, a multiple of 8
    # sublanes, and dividing R exactly (no ragged last block, no wasted work).
    tr = max((min(samples_per_tile // GROUP, R) // 8) * 8, 8)
    while R % tr != 0:
        tr -= 8

    out = pl.pallas_call(
        fcnet_kernel,
        out_shape=jax.ShapeDtypeStruct((R, OUT_COLS), jnp.float32),
        grid=(R // tr,),
        in_specs=[
            pl.BlockSpec((tr, IN_COLS), lambda i: (i, 0)),        # batch-tiled x
            pl.BlockSpec((IN_COLS, OUT_COLS), lambda i: (0, 0)),  # weight resident
            pl.BlockSpec((1, OUT_COLS), lambda i: (0, 0)),        # bias resident
        ],
        out_specs=pl.BlockSpec((tr, OUT_COLS), lambda i: (i, 0)),
        compiler_params=pltpu.CompilerParams(
            dimension_semantics=("parallel",)),
    )(xr, w_diag, b_tiled)

    out = out.reshape(b_pad, 2)                          # free row-major reinterpretation
    return out if b_pad == B else out[:B]                # padded rows are garbage; drop


def init_params(key):
    """Deterministic init mimicking nn.Linear default (uniform(+-1/sqrt(fan_in)))."""
    def linear(key, fan_in, fan_out):
        kw, kb = jax.random.split(key)
        bound = 1.0 / jnp.sqrt(fan_in)
        # stored as (in, out): transpose of PyTorch's (out, in) weight
        w = jax.random.uniform(kw, (fan_in, fan_out), jnp.float32, -bound, bound)
        b = jax.random.uniform(kb, (1, fan_out), jnp.float32, -bound, bound)
        return w, b

    k1, k2, k3 = jax.random.split(key, 3)
    w1, b1 = linear(k1, 8, 8)
    w2, b2 = linear(k2, 8, 8)
    w3, b3 = linear(k3, 8, 2)
    return w1, b1, w2, b2, w3, b3


def fcnet_reference(x, params):
    """Unfused f32 reference matching the PyTorch forward."""
    w1, b1, w2, b2, w3, b3 = params
    h = x @ w1 + b1
    h = h @ w2 + b2
    h = h @ w3 + b3
    return jnp.tanh(h / 100.0) * MAX_VELOCITY


if __name__ == "__main__":
    key = jax.random.PRNGKey(0)
    k_params, k_x1, k_x2 = jax.random.split(key, 3)
    params = init_params(k_params)
    w_diag, b_tiled = fuse_params(params)

    # Case 1: ragged batch -> exercises bounded (<512-sample) padding, a
    # multi-step grid (tile = 512 samples -> 2 steps) and the tail slice.
    B1 = 1000
    x1 = jax.random.normal(k_x1, (B1, 8), jnp.float32)
    out1 = jax.block_until_ready(
        fcnet_forward(x1, w_diag, b_tiled, samples_per_tile=512))
    ref1 = fcnet_reference(x1, params)
    assert out1.shape == (B1, 2)
    assert jnp.allclose(out1, ref1, atol=2e-3, rtol=2e-2), float(
        jnp.max(jnp.abs(out1 - ref1)))

    # Case 2: aligned batch, default tile (single grid step, no pad/slice path).
    B2 = 4096
    x2 = jax.random.normal(k_x2, (B2, 8), jnp.float32)
    out2 = jax.block_until_ready(fcnet_forward(x2, w_diag, b_tiled))
    ref2 = fcnet_reference(x2, params)
    assert out2.shape == (B2, 2)
    assert jnp.allclose(out2, ref2, atol=2e-3, rtol=2e-2), float(
        jnp.max(jnp.abs(out2 - ref2)))

    print("KERNEL_OK")
</pallas_src>

<mosaic_0001>
module attributes {stable_mosaic.version = 11 : i64} {
  func.func @fcnet_kernel(%arg0: i32, %arg1: memref<8x512xf32, #tpu.memory_space<vmem>>, %arg2: memref<512x128xbf16, #tpu.memory_space<vmem>>, %arg3: memref<1x128xf32, #tpu.memory_space<vmem>>, %arg4: memref<8x128xf32, #tpu.memory_space<vmem>>) attributes {dimension_semantics = [#tpu.dimension_semantics<parallel>], iteration_bounds = array<i64: 2>, scalar_prefetch = 0 : i64, scratch_operands = 0 : i64, tpu.core_type = #tpu.core_type<tc>, window_params = [{transform_indices = @transform_0, window_bounds = array<i64: 8, 512>}, {pipeline_mode = #tpu.pipeline_mode<synchronous>, transform_indices = @transform_1, window_bounds = array<i64: 512, 128>}, {pipeline_mode = #tpu.pipeline_mode<synchronous>, transform_indices = @transform_2, window_bounds = array<i64: 1, 128>}, {transform_indices = @transform_3, window_bounds = array<i64: 8, 128>}]} {
    %c0 = arith.constant 0 : index
    %c0_0 = arith.constant 0 : index
    %0 = vector.load %arg1[%c0, %c0_0] : memref<8x512xf32, #tpu.memory_space<vmem>>, vector<8x512xf32>
    %1 = arith.truncf %0 : vector<8x512xf32> to vector<8x512xbf16>
    %c0_1 = arith.constant 0 : index
    %c0_2 = arith.constant 0 : index
    %2 = vector.load %arg2[%c0_1, %c0_2] : memref<512x128xbf16, #tpu.memory_space<vmem>>, vector<512x128xbf16>
    %cst = arith.constant dense<0.000000e+00> : vector<8x128xf32>
    %3 = tpu.matmul %1, %2, %cst {dimension_numbers = #tpu.dot_dimension_numbers<[1], [0], [0], [1], [0, 0, 1, 1], [], []>} : vector<8x512xbf16>, vector<512x128xbf16>, vector<8x128xf32> -> vector<8x128xf32>
    %c0_3 = arith.constant 0 : index
    %c0_4 = arith.constant 0 : index
    %4 = vector.load %arg3[%c0_3, %c0_4] : memref<1x128xf32, #tpu.memory_space<vmem>>, vector<1x128xf32>
    %5 = vector.broadcast %4 : vector<1x128xf32> to vector<8x128xf32>
    %6 = arith.addf %3, %5 : vector<8x128xf32>
    %7 = math.tanh %6 : vector<8x128xf32>
    %cst_5 = arith.constant 2.000000e+00 : f32
    %8 = vector.broadcast %cst_5 : f32 to vector<8x128xf32>
    %9 = arith.mulf %7, %8 : vector<8x128xf32>
    %c0_6 = arith.constant 0 : index
    %c0_7 = arith.constant 0 : index
    %10 = vector.load %arg4[%c0_6, %c0_7] : memref<8x128xf32, #tpu.memory_space<vmem>>, vector<8x128xf32>
    tpu.vector_store %arg4[%c0_6, %c0_7], %9 {strides = array<i32>} : memref<8x128xf32, #tpu.memory_space<vmem>>, vector<8x128xf32>,
    return
  }
  func.func @transform_0(%arg0: i32) -> (i32, i32) {
    %c0_i32 = arith.constant 0 : i32
    %c0_i32_0 = arith.constant 0 : i32
    return %arg0, %c0_i32 : i32, i32
  }
  func.func @transform_1(%arg0: i32) -> (i32, i32) {
    %c0_i32 = arith.constant 0 : i32
    %c0_i32_0 = arith.constant 0 : i32
    %c0_i32_1 = arith.constant 0 : i32
    return %c0_i32, %c0_i32_0 : i32, i32
  }
  func.func @transform_2(%arg0: i32) -> (i32, i32) {
    %c0_i32 = arith.constant 0 : i32
    %c0_i32_0 = arith.constant 0 : i32
    %c0_i32_1 = arith.constant 0 : i32
    return %c0_i32, %c0_i32_0 : i32, i32
  }
  func.func @transform_3(%arg0: i32) -> (i32, i32) {
    %c0_i32 = arith.constant 0 : i32
    %c0_i32_0 = arith.constant 0 : i32
    return %arg0, %c0_i32 : i32, i32
  }
}

</mosaic_0001>

<llo_original>
// kernel: fcnet_forward.1
$region0: #{fcnet_forward.1}
  #allocation0 [shape = 'u32[]', space=smem, size = 0x4, offset = 0x4, fixed_abs, tag = 'smem constant byte address 0x4 - core index']
  #allocation1 [shape = 'u32[72,128]{1,0:T(1,128)}', space=vmem, size = 0x9000, scoped, tag = 'internal scratch']
  %s0 = inlined_call_operand.vmem [shape: f32[16,512], index: 0, kind: input, shape index: {}]
  %s1 = inlined_call_operand.vmem [shape: bf16[512,128], index: 1, kind: input, shape index: {}]
  %s2 = inlined_call_operand.vmem [shape: f32[1,128], index: 2, kind: input, shape index: {}]
  %s3 = inlined_call_operand.vmem [shape: f32[16,128], index: 3, kind: output, shape index: {}]
  %s4 = sld [smem:[#allocation0]]
  $region45: #{fcnet_forward.1} parent=0
    _
  %s6 = ssub.s32 1, %s4
  %s7 = scalar_select 0, %s6, %s4
  loop: start=0, step=1, limit=4
  $region2: #{fcnet_forward.1} parent=0 // loop_pre_header
    _
  $region3: #{fcnet_forward.1} parent=0 // loop_header
    %s9 = sphi 0, %s13
    %p10 = scmp.ge.s32.totalorder %s9, 4
    %s19 = sphi 0, %s21
    %s22 = sphi 0, %s19
    %s23 = sphi 0, %s22
    %s39 = sphi 0, %s23
    %s43 = sphi 0, %s43
    %s45 = sphi 0, %s43
    %s46 = sphi 0, %s45
    %s60 = sphi 0, %s46
    %s64 = sphi 0, %s64
    %s66 = sphi 0, %s64
    %s67 = sphi 0, %s66
    %s81 = sphi 0, %s67
    %s87 = sphi 0, %s89
    %s90 = sphi 0, %s87
    %s91 = sphi 0, %s90
    %s107 = sphi 0, %s91
  $region4: #{fcnet_forward.1} parent=0 // loop_header_branch
    %12 = sbr.rel (%p10) target = $region8
  $region5: #{fcnet_forward.1} parent=0 // loop_body
    %s14 = ssub.s32 %s9, 1
    %s15 = ssub.s32 %s9, 2
    %s16 = sadd.s32 %s9, 1
    %s17 = ssub.s32 %s9, %s16
    %p18 = scmp.eq.s32.totalorder %s17, 0
    %s20 = sadd.s32 %s19, 1
    %s21 = scalar_select %p18, %s19, %s20
    %p24 = pneg %p18
    %p25 = scmp.eq.s32.totalorder %s9, 1
    %p26 = por %p24, %p25
    %p27 = scmp.ne.s32.totalorder %s19, %s22
    %p28 = scmp.eq.s32.totalorder %s9, 0
    %p29 = por %p27, %p28
    %p30 = scmp.ne.s32.totalorder %s19, %s22
    %p31 = scmp.eq.s32.totalorder %s14, 1
    %p32 = por %p30, %p31
    %p33 = scmp.ne.s32.totalorder %s22, %s23
    %p34 = scmp.eq.s32.totalorder %s14, 0
    %p35 = por %p33, %p34
    %p36 = scmp.ne.s32.totalorder %s22, %s23
    %p37 = scmp.eq.s32.totalorder %s15, 1
    %p38 = por %p36, %p37
    %p40 = scmp.ne.s32.totalorder %s23, %s39
    %p41 = scmp.eq.s32.totalorder %s15, 0
    %p42 = por %p40, %p41
    %s44 = sadd.s32 %s43, 1
    %p47 = scmp.eq.s32.totalorder %s9, 1
    %p48 = scmp.ne.s32.totalorder %s43, %s45
    %p49 = scmp.eq.s32.totalorder %s9, 0
    %p50 = por %p48, %p49
    %p51 = scmp.ne.s32.totalorder %s43, %s45
    %p52 = scmp.eq.s32.totalorder %s14, 1
    %p53 = por %p51, %p52
    %p54 = scmp.ne.s32.totalorder %s45, %s46
    %p55 = scmp.eq.s32.totalorder %s14, 0
    %p56 = por %p54, %p55
    %p57 = scmp.ne.s32.totalorder %s45, %s46
    %p58 = scmp.eq.s32.totalorder %s15, 1
    %p59 = por %p57, %p58
    %p61 = scmp.ne.s32.totalorder %s46, %s60
    %p62 = scmp.eq.s32.totalorder %s15, 0
    %p63 = por %p61, %p62
    %s65 = sadd.s32 %s64, 1
    %p68 = scmp.eq.s32.totalorder %s9, 1
    %p69 = scmp.ne.s32.totalorder %s64, %s66
    %p70 = scmp.eq.s32.totalorder %s9, 0
    %p71 = por %p69, %p70
    %p72 = scmp.ne.s32.totalorder %s64, %s66
    %p73 = scmp.eq.s32.totalorder %s14, 1
    %p74 = por %p72, %p73
    %p75 = scmp.ne.s32.totalorder %s66, %s67
    %p76 = scmp.eq.s32.totalorder %s14, 0
    %p77 = por %p75, %p76
    %p78 = scmp.ne.s32.totalorder %s66, %s67
    %p79 = scmp.eq.s32.totalorder %s15, 1
    %p80 = por %p78, %p79
    %p82 = scmp.ne.s32.totalorder %s67, %s81
    %p83 = scmp.eq.s32.totalorder %s15, 0
    %p84 = por %p82, %p83
    %s85 = ssub.s32 %s9, %s16
    %p86 = scmp.eq.s32.totalorder %s85, 0
    %s88 = sadd.s32 %s87, 1
    %s89 = scalar_select %p86, %s87, %s88
    %p92 = pneg %p86
    %p93 = scmp.eq.s32.totalorder %s9, 1
    %p94 = por %p92, %p93
    %p95 = scmp.ne.s32.totalorder %s87, %s90
    %p96 = scmp.eq.s32.totalorder %s9, 0
    %p97 = por %p95, %p96
    %p98 = scmp.ne.s32.totalorder %s87, %s90
    %p99 = scmp.eq.s32.totalorder %s14, 1
    %p100 = por %p98, %p99
    %p101 = scmp.ne.s32.totalorder %s90, %s91
    %p102 = scmp.eq.s32.totalorder %s14, 0
    %p103 = por %p101, %p102
    %p104 = scmp.ne.s32.totalorder %s90, %s91
    %p105 = scmp.eq.s32.totalorder %s15, 1
    %p106 = por %p104, %p105
    %p108 = scmp.ne.s32.totalorder %s91, %s107
    %p109 = scmp.eq.s32.totalorder %s15, 0
    %p110 = por %p108, %p109
    %p111 = scmp.le.s32.totalorder 1, %s9
    %p112 = scmp.lt.s32.totalorder %s9, 3
    %p113 = pnand %p111, %p112
    %p114 = pneg %p113
    // Predicated region
    $region9: #{fcnet_forward.1} parent=5 // pred_check
      _
    $region10: #{fcnet_forward.1} parent=5 // pred_check_branch
      %116 = sbr.rel (%p113) target = $region12
    $region11: #{fcnet_forward.1} parent=5 // pred_region
      %s117 = ssub.s32 %s9, 1
      // Predicated region
      $region13: #{fcnet_forward.1} parent=11 // pred_check
        %p118 = pneg %p56
      $region14: #{fcnet_forward.1} parent=11 // pred_check_branch
        %120 = sbr.rel (%p118) target = $region16
      $region15: #{fcnet_forward.1} parent=11 // pred_region
        _
      $region16: #{fcnet_forward.1} parent=11 // pred_fallthru
        _
      // Predicated region
      $region17: #{fcnet_forward.1} parent=11 // pred_check
        %p121 = pneg %p77
      $region18: #{fcnet_forward.1} parent=11 // pred_check_branch
        %123 = sbr.rel (%p121) target = $region20
      $region19: #{fcnet_forward.1} parent=11 // pred_region
        _
      $region20: #{fcnet_forward.1} parent=11 // pred_fallthru
        _
    $region12: #{fcnet_forward.1} parent=5 // pred_fallthru
      _
    %p124 = scmp.lt.s32.totalorder %s9, 2
    // Predicated region
    $region21: #{fcnet_forward.1} parent=5 // pred_check
      %p125 = pneg %p124
    $region22: #{fcnet_forward.1} parent=5 // pred_check_branch
      %127 = sbr.rel (%p125) target = $region24
    $region23: #{fcnet_forward.1} parent=5 // pred_region
      // Predicated region
      $region25: #{fcnet_forward.1} parent=23 // pred_check
        %p128 = pneg %p29
      $region26: #{fcnet_forward.1} parent=23 // pred_check_branch
        %130 = sbr.rel (%p128) target = $region28
      $region27: #{fcnet_forward.1} parent=23 // pred_region
        %p131 = scmp.lt.s32.totalorder %s9, 1
        %s132 = scalar_select %p131, %s9, 1
        %s133 = smul.addr %s132, 4
        %s134 = smul.addr %s133, 8
        %s135 = scalar_lea.vmem %s0, %s134
      $region28: #{fcnet_forward.1} parent=23 // pred_fallthru
        _
    $region24: #{fcnet_forward.1} parent=5 // pred_fallthru
      _
    %p136 = scmp.le.s32.totalorder 1, %s9
    %p137 = scmp.lt.s32.totalorder %s9, 3
    %p138 = pnand %p136, %p137
    %p139 = pneg %p138
    // Predicated region
    $region29: #{fcnet_forward.1} parent=5 // pred_check
      _
    $region30: #{fcnet_forward.1} parent=5 // pred_check_branch
      %141 = sbr.rel (%p138) target = $region32
    $region31: #{fcnet_forward.1} parent=5 // pred_region
      %s142 = ssub.s32 %s9, 1
      %p143 = scmp.lt.s32.totalorder %s14, 1
      %s144 = scalar_select %p143, %s14, 1
      %s145 = smul.addr %s144, 4
      %s146 = smul.addr %s145, 8
      %s147 = scalar_lea.vmem %s0, %s146
      %p148 = pneg %p35
      %p149 = pneg %p32
      %p150 = pneg %p56
      %p151 = pneg %p53
      %p152 = pneg %p77
      %p153 = pneg %p74
      %p154 = pneg %p103
      %p155 = pneg %p100
      %p156 = scmp.lt.s32.totalorder %s14, 1
      %s157 = scalar_select %p156, %s14, 1
      %s158 = smul.addr %s157, 8
      %s159 = scalar_lea.vmem %s3, %s158
      %p160 = scmp.lt.s32.totalorder %s14, 1
      %s161 = scalar_select %p160, %s14, 1
      %s162 = smul.addr %s161, 4
      %s163 = smul.addr %s162, 8
      %s164 = scalar_lea.vmem %s0, %s163
      %p165 = scmp.lt.s32.totalorder %s14, 1
      %s166 = scalar_select %p165, %s14, 1
      %s167 = smul.addr %s166, 8
      %s168 = scalar_lea.vmem %s3, %s167
      %v169 = vld [vmem:[%s164] sm:$0xff]
      %v170 = vld [vmem:[%s164 + $0x8] sm:$0xff]
      %v171 = vld [vmem:[%s164 + $0x10] sm:$0xff]
      %v172 = vld [vmem:[%s164 + $0x18] sm:$0xff]
      %v173 = vpack.c.bf16 %v169, %v169
      %v174 = vpack.c.bf16 %v170, %v170
      %v175 = vpack.c.bf16 %v171, %v171
      %v176 = vpack.c.bf16 %v172, %v172
      %v177 = vld [vmem:[%s1] sm:$0xf]
      %v178 = vld [vmem:[%s1 + $0x4] sm:$0xf]
      %v179 = vld [vmem:[%s1 + $0x8] sm:$0xf]
      %v180 = vld [vmem:[%s1 + $0xc] sm:$0xf]
      %v181 = vld [vmem:[%s1 + $0x10] sm:$0xf]
      %v182 = vld [vmem:[%s1 + $0x14] sm:$0xf]
      %v183 = vld [vmem:[%s1 + $0x18] sm:$0xf]
      %v184 = vld [vmem:[%s1 + $0x1c] sm:$0xf]
      %v185 = vld [vmem:[%s1 + $0x20] sm:$0xf]
      %v186 = vld [vmem:[%s1 + $0x24] sm:$0xf]
      %v187 = vld [vmem:[%s1 + $0x28] sm:$0xf]
      %v188 = vld [vmem:[%s1 + $0x2c] sm:$0xf]
      %v189 = vld [vmem:[%s1 + $0x30] sm:$0xf]
      %v190 = vld [vmem:[%s1 + $0x34] sm:$0xf]
      %v191 = vld [vmem:[%s1 + $0x38] sm:$0xf]
      %v192 = vld [vmem:[%s1 + $0x3c] sm:$0xf]
      %v193 = vld [vmem:[%s1 + $0x40] sm:$0xf]
      %v194 = vld [vmem:[%s1 + $0x44] sm:$0xf]
      %v195 = vld [vmem:[%s1 + $0x48] sm:$0xf]
      %v196 = vld [vmem:[%s1 + $0x4c] sm:$0xf]
      %v197 = vld [vmem:[%s1 + $0x50] sm:$0xf]
      %v198 = vld [vmem:[%s1 + $0x54] sm:$0xf]
      %v199 = vld [vmem:[%s1 + $0x58] sm:$0xf]
      %v200 = vld [vmem:[%s1 + $0x5c] sm:$0xf]
      %v201 = vld [vmem:[%s1 + $0x60] sm:$0xf]
      %v202 = vld [vmem:[%s1 + $0x64] sm:$0xf]
      %v203 = vld [vmem:[%s1 + $0x68] sm:$0xf]
      %v204 = vld [vmem:[%s1 + $0x6c] sm:$0xf]
      %v205 = vld [vmem:[%s1 + $0x70] sm:$0xf]
      %v206 = vld [vmem:[%s1 + $0x74] sm:$0xf]
      %v207 = vld [vmem:[%s1 + $0x78] sm:$0xf]
      %v208 = vld [vmem:[%s1 + $0x7c] sm:$0xf]
      %v209 = vld [vmem:[%s1 + $0x80] sm:$0xf]
      %v210 = vld [vmem:[%s1 + $0x84] sm:$0xf]
      %v211 = vld [vmem:[%s1 + $0x88] sm:$0xf]
      %v212 = vld [vmem:[%s1 + $0x8c] sm:$0xf]
      %v213 = vld [vmem:[%s1 + $0x90] sm:$0xf]
      %v214 = vld [vmem:[%s1 + $0x94] sm:$0xf]
      %v215 = vld [vmem:[%s1 + $0x98] sm:$0xf]
      %v216 = vld [vmem:[%s1 + $0x9c] sm:$0xf]
      %v217 = vld [vmem:[%s1 + $0xa0] sm:$0xf]
      %v218 = vld [vmem:[%s1 + $0xa4] sm:$0xf]
      %v219 = vld [vmem:[%s1 + $0xa8] sm:$0xf]
      %v220 = vld [vmem:[%s1 + $0xac] sm:$0xf]
      %v221 = vld [vmem:[%s1 + $0xb0] sm:$0xf]
      %v222 = vld [vmem:[%s1 + $0xb4] sm:$0xf]
      %v223 = vld [vmem:[%s1 + $0xb8] sm:$0xf]
      %v224 = vld [vmem:[%s1 + $0xbc] sm:$0xf]
      %v225 = vld [vmem:[%s1 + $0xc0] sm:$0xf]
      %v226 = vld [vmem:[%s1 + $0xc4] sm:$0xf]
      %v227 = vld [vmem:[%s1 + $0xc8] sm:$0xf]
      %v228 = vld [vmem:[%s1 + $0xcc] sm:$0xf]
      %v229 = vld [vmem:[%s1 + $0xd0] sm:$0xf]
      %v230 = vld [vmem:[%s1 + $0xd4] sm:$0xf]
      %v231 = vld [vmem:[%s1 + $0xd8] sm:$0xf]
      %v232 = vld [vmem:[%s1 + $0xdc] sm:$0xf]
      %v233 = vld [vmem:[%s1 + $0xe0] sm:$0xf]
      %v234 = vld [vmem:[%s1 + $0xe4] sm:$0xf]
      %v235 = vld [vmem:[%s1 + $0xe8] sm:$0xf]
      %v236 = vld [vmem:[%s1 + $0xec] sm:$0xf]
      %v237 = vld [vmem:[%s1 + $0xf0] sm:$0xf]
      %v238 = vld [vmem:[%s1 + $0xf4] sm:$0xf]
      %v239 = vld [vmem:[%s1 + $0xf8] sm:$0xf]
      %v240 = vld [vmem:[%s1 + $0xfc] sm:$0xf]
      %v241 = vld [vmem:[%s2] sm:$0x1]
      %v243 = vperm.slane %v241, 0
      %v309 = vunpack.c.l.b16 %v177
      %v310 = vunpack.c.l.b16 %v178
      %v311 = vunpack.c.l.b16 %v179
      %v312 = vunpack.c.l.b16 %v180
      %v313 = vunpack.c.l.b16 %v181
      %v314 = vunpack.c.l.b16 %v182
      %v315 = vunpack.c.l.b16 %v183
      %v316 = vunpack.c.l.b16 %v184
      %v317 = vunpack.c.l.b16 %v185
      %v318 = vunpack.c.l.b16 %v186
      %v319 = vunpack.c.l.b16 %v187
      %v320 = vunpack.c.l.b16 %v188
      %v321 = vunpack.c.l.b16 %v189
      %v322 = vunpack.c.l.b16 %v190
      %v323 = vunpack.c.l.b16 %v191
      %v324 = vunpack.c.l.b16 %v192
      %v325 = vunpack.c.l.b16 %v193
      %v326 = vunpack.c.l.b16 %v194
      %v327 = vunpack.c.l.b16 %v195
      %v328 = vunpack.c.l.b16 %v196
      %v329 = vunpack.c.l.b16 %v197
      %v330 = vunpack.c.l.b16 %v198
      %v331 = vunpack.c.l.b16 %v199
      %v332 = vunpack.c.l.b16 %v200
      %v333 = vunpack.c.l.b16 %v201
      %v334 = vunpack.c.l.b16 %v202
      %v335 = vunpack.c.l.b16 %v203
      %v336 = vunpack.c.l.b16 %v204
      %v337 = vunpack.c.l.b16 %v205
      %v338 = vunpack.c.l.b16 %v206
      %v339 = vunpack.c.l.b16 %v207
      %v340 = vunpack.c.l.b16 %v208
      %v341 = vunpack.c.l.b16 %v209
      %v342 = vunpack.c.l.b16 %v210
      %v343 = vunpack.c.l.b16 %v211
      %v344 = vunpack.c.l.b16 %v212
      %v345 = vunpack.c.l.b16 %v213
      %v346 = vunpack.c.l.b16 %v214
      %v347 = vunpack.c.l.b16 %v215
      %v348 = vunpack.c.l.b16 %v216
      %v349 = vunpack.c.l.b16 %v217
      %v350 = vunpack.c.l.b16 %v218
      %v351 = vunpack.c.l.b16 %v219
      %v352 = vunpack.c.l.b16 %v220
      %v353 = vunpack.c.l.b16 %v221
      %v354 = vunpack.c.l.b16 %v222
      %v355 = vunpack.c.l.b16 %v223
      %v356 = vunpack.c.l.b16 %v224
      %v357 = vunpack.c.l.b16 %v225
      %v358 = vunpack.c.l.b16 %v226
      %v359 = vunpack.c.l.b16 %v227
      %v360 = vunpack.c.l.b16 %v228
      %v361 = vunpack.c.l.b16 %v229
      %v362 = vunpack.c.l.b16 %v230
      %v363 = vunpack.c.l.b16 %v231
      %v364 = vunpack.c.l.b16 %v232
      %v365 = vunpack.c.l.b16 %v233
      %v366 = vunpack.c.l.b16 %v234
      %v367 = vunpack.c.l.b16 %v235
      %v368 = vunpack.c.l.b16 %v236
      %v369 = vunpack.c.l.b16 %v237
      %v370 = vunpack.c.l.b16 %v238
      %v371 = vunpack.c.l.b16 %v239
      %v372 = vunpack.c.l.b16 %v240
      %v373 = vpack.c.b16 %v310, %v309
      %v374 = vpack.c.b16 %v312, %v311
      %v375 = vpack.c.b16 %v314, %v313
      %v376 = vpack.c.b16 %v316, %v315
      %v377 = vpack.c.b16 %v318, %v317
      %v378 = vpack.c.b16 %v320, %v319
      %v379 = vpack.c.b16 %v322, %v321
      %v380 = vpack.c.b16 %v324, %v323
      %v381 = vpack.c.b16 %v326, %v325
      %v382 = vpack.c.b16 %v328, %v327
      %v383 = vpack.c.b16 %v330, %v329
      %v384 = vpack.c.b16 %v332, %v331
      %v385 = vpack.c.b16 %v334, %v333
      %v386 = vpack.c.b16 %v336, %v335
      %v387 = vpack.c.b16 %v338, %v337
      %v388 = vpack.c.b16 %v340, %v339
      %v389 = vpack.c.b16 %v342, %v341
      %v390 = vpack.c.b16 %v344, %v343
      %v391 = vpack.c.b16 %v346, %v345
      %v392 = vpack.c.b16 %v348, %v347
      %v393 = vpack.c.b16 %v350, %v349
      %v394 = vpack.c.b16 %v352, %v351
      %v395 = vpack.c.b16 %v354, %v353
      %v396 = vpack.c.b16 %v356, %v355
      %v397 = vpack.c.b16 %v358, %v357
      %v398 = vpack.c.b16 %v360, %v359
      %v399 = vpack.c.b16 %v362, %v361
      %v400 = vpack.c.b16 %v364, %v363
      %v401 = vpack.c.b16 %v366, %v365
      %v402 = vpack.c.b16 %v368, %v367
      %v403 = vpack.c.b16 %v370, %v369
      %v404 = vpack.c.b16 %v372, %v371
      %437 = vmatpush.bf16.msra.mxu0 %v380
      %438 = vmatpush.bf16.msra.mxu0 %v379
      %439 = vmatpush.bf16.msra.mxu0 %v378
      %440 = vmatpush.bf16.msra.mxu0 %v377
      %441 = vmatpush.bf16.msra.mxu0 %v376
      %442 = vmatpush.bf16.msra.mxu0 %v375
      %443 = vmatpush.bf16.msra.mxu0 %v374
      %444 = vmatpush.bf16.msra.mxu0 %v373
      %445 = vmatmul.bf16.gmra.mxu0 %v173
      %v446 = vpop.f32.mrf.mxu0
      %v447 = vadd.f32 %v243, %v446
      %v448 = vpop.f32.mrf.mxu0
      %449 = vdwg.mxu0
      %450 = vmatpush.bf16.msra.mxu0 %v388
      %451 = vmatpush.bf16.msra.mxu0 %v387
      %452 = vmatpush.bf16.msra.mxu0 %v386
      %453 = vmatpush.bf16.msra.mxu0 %v385
      %454 = vmatpush.bf16.msra.mxu0 %v384
      %455 = vmatpush.bf16.msra.mxu0 %v383
      %456 = vmatpush.bf16.msra.mxu0 %v382
      %457 = vmatpush.bf16.msra.mxu0 %v381
      %458 = vmatmul.bf16.gmra.mxu0 %v174
      %v459 = vpop.f32.mrf.mxu0
      %v460 = vadd.f32 %v447, %v459
      %v461 = vpop.f32.mrf.mxu0
      %462 = vdwg.mxu0
      %463 = vmatpush.bf16.msra.mxu0 %v396
      %464 = vmatpush.bf16.msra.mxu0 %v395
      %465 = vmatpush.bf16.msra.mxu0 %v394
      %466 = vmatpush.bf16.msra.mxu0 %v393
      %467 = vmatpush.bf16.msra.mxu0 %v392
      %468 = vmatpush.bf16.msra.mxu0 %v391
      %469 = vmatpush.bf16.msra.mxu0 %v390
      %470 = vmatpush.bf16.msra.mxu0 %v389
      %471 = vmatmul.bf16.gmra.mxu0 %v175
      %v472 = vpop.f32.mrf.mxu0
      %v473 = vadd.f32 %v460, %v472
      %v474 = vpop.f32.mrf.mxu0
      %475 = vdwg.mxu0
      %476 = vmatpush.bf16.msra.mxu0 %v404
      %477 = vmatpush.bf16.msra.mxu0 %v403
      %478 = vmatpush.bf16.msra.mxu0 %v402
      %479 = vmatpush.bf16.msra.mxu0 %v401
      %480 = vmatpush.bf16.msra.mxu0 %v400
      %481 = vmatpush.bf16.msra.mxu0 %v399
      %482 = vmatpush.bf16.msra.mxu0 %v398
      %483 = vmatpush.bf16.msra.mxu0 %v397
      %484 = vmatmul.bf16.gmra.mxu0 %v176
      %v485 = vpop.f32.mrf.mxu0
      %v486 = vadd.f32 %v473, %v485
      %v487 = vpop.f32.mrf.mxu0
      %488 = vdwg.mxu0
      %v489 = vtanh.pop %v486
      %v490 = vmul.f32 %v489, 2.0
      %491 = vst [vmem:[%s168] sm:$0xff] %v490
      %p492 = scmp.lt.s32.totalorder %s14, 1
      %s493 = scalar_select %p492, %s14, 1
      %s494 = smul.addr %s493, 8
      %s495 = scalar_lea.vmem %s3, %s494
      // Predicated region
      $region33: #{fcnet_forward.1} parent=31 // pred_check
        %p496 = pneg %p100
      $region34: #{fcnet_forward.1} parent=31 // pred_check_branch
        %498 = sbr.rel (%p496) target = $region36
      $region35: #{fcnet_forward.1} parent=31 // pred_region
        _
      $region36: #{fcnet_forward.1} parent=31 // pred_fallthru
        _
    $region32: #{fcnet_forward.1} parent=5 // pred_fallthru
      _
    %p499 = scmp.le.s32.totalorder 2, %s9
    // Predicated region
    $region37: #{fcnet_forward.1} parent=5 // pred_check
      %p500 = pneg %p499
    $region38: #{fcnet_forward.1} parent=5 // pred_check_branch
      %502 = sbr.rel (%p500) target = $region40
    $region39: #{fcnet_forward.1} parent=5 // pred_region
      %s503 = ssub.s32 %s9, 2
      // Predicated region
      $region41: #{fcnet_forward.1} parent=39 // pred_check
        %p504 = pneg %p106
      $region42: #{fcnet_forward.1} parent=39 // pred_check_branch
        %506 = sbr.rel (%p504) target = $region44
      $region43: #{fcnet_forward.1} parent=39 // pred_region
        %p507 = scmp.lt.s32.totalorder %s15, 1
        %s508 = scalar_select %p507, %s15, 1
        %s509 = smul.addr %s508, 8
        %s510 = scalar_lea.vmem %s3, %s509
      $region44: #{fcnet_forward.1} parent=39 // pred_fallthru
        _
    $region40: #{fcnet_forward.1} parent=5 // pred_fallthru
      _
  $region6: #{fcnet_forward.1} parent=0 // loop_footer
    %s13 = sadd.s32 1, %s9
  $region7: #{fcnet_forward.1} parent=0 // loop_footer_branch
    %8 = sbr.rel target = $region3
  $region8: #{fcnet_forward.1} parent=0 // loop_exit
    _

</llo_original>
